<compile_context>
chip_gen: v7x
topology: tpu7x:2x2x1
jax: 0.10.0
libtpu: 0.0.40
codegen_flags: <defaults>
</compile_context>

<pallas_src>
import jax
import jax.numpy as jnp
from jax.experimental import pallas as pl
from jax.experimental.pallas import tpu as pltpu

# ----------------------------- config ----------------------------------------
EMBEDDING_DIM = 32     # embedding_dim (D)
FF_HIDDEN = 64         # ff_hidden_dim (H)
BATCH = 2
SEQ = 16               # problem_size / sequence length


# ----------------------------- kernel -----------------------------------------
def ff_kernel(x_ref, w1_ref, b1_ref, w2_ref, b2_ref, o_ref):
    # Single invocation: every ref is the full array, resident in VMEM.
    # x_ref: (M, D) flattened (B*N, D) activation rows.
    x = x_ref[...]
    h = jnp.dot(x, w1_ref[...], preferred_element_type=jnp.float32) + b1_ref[...]
    h = jnp.maximum(h, 0.0)                               # F.relu
    y = jnp.dot(h, w2_ref[...], preferred_element_type=jnp.float32) + b2_ref[...]
    o_ref[...] = y.astype(o_ref.dtype)                    # one full-block store


# ----------------------------- wrapper ----------------------------------------
def feed_forward(x, w1, b1, w2, b2):
    """x: (B, N, D) float32.  Returns (B, N, D)."""
    B, N, D = x.shape
    H = w1.shape[1]
    M = B * N
    x2 = x.reshape(M, D)                                  # fuse batch into M

    flops = 4 * M * D * H                                 # two matmuls, 2*M*D*H each
    bytes_accessed = 4 * (M * D + D * H + H + H * D + D + M * D)
    cost = pl.CostEstimate(flops=flops, transcendentals=0,
                           bytes_accessed=bytes_accessed)

    # No grid: one kernel step, every operand is a single full-array block.
    out2 = pl.pallas_call(
        ff_kernel,
        out_shape=jax.ShapeDtypeStruct((M, D), x.dtype),
        in_specs=[
            pl.BlockSpec((M, D), lambda: (0, 0)),          # activation (resident)
            pl.BlockSpec((D, H), lambda: (0, 0)),          # W1 (fetched once)
            pl.BlockSpec((1, H), lambda: (0, 0)),          # b1
            pl.BlockSpec((H, D), lambda: (0, 0)),          # W2 (fetched once)
            pl.BlockSpec((1, D), lambda: (0, 0)),          # b2
        ],
        out_specs=pl.BlockSpec((M, D), lambda: (0, 0)),    # single dense block
        cost_estimate=cost,
    )(x2, w1, b1, w2, b2)

    return out2.reshape(B, N, D)


# ----------------------------- reference (pure JAX) ----------------------------
def feed_forward_ref(x, w1, b1, w2, b2):
    h = jnp.maximum(x @ w1 + b1, 0.0)
    return h @ w2 + b2


# ----------------------------- main -------------------------------------------
if __name__ == "__main__":
    key = jax.random.PRNGKey(0)
    kx, k1, kb1, k2, kb2 = jax.random.split(key, 5)

    D, H = EMBEDDING_DIM, FF_HIDDEN
    x = jax.random.normal(kx, (BATCH, SEQ, D), jnp.float32)
    # nn.Linear-style init (transposed storage: (in, out))
    w1 = jax.random.normal(k1, (D, H), jnp.float32) / jnp.sqrt(D)
    b1 = jax.random.normal(kb1, (1, H), jnp.float32) * 0.01
    w2 = jax.random.normal(k2, (H, D), jnp.float32) / jnp.sqrt(H)
    b2 = jax.random.normal(kb2, (1, D), jnp.float32) * 0.01

    y = feed_forward(x, w1, b1, w2, b2)
    y = jax.block_until_ready(y)

    y_ref = feed_forward_ref(x, w1, b1, w2, b2)

    assert y.shape == (BATCH, SEQ, D)
    assert bool(jnp.all(jnp.isfinite(y)))
    assert bool(jnp.allclose(y, y_ref, atol=1e-5, rtol=1e-5))
    print("KERNEL_OK")
</pallas_src>

<mosaic_0001>
module attributes {stable_mosaic.version = 11 : i64} {
  func.func @ff_kernel(%arg0: memref<32x32xf32, #tpu.memory_space<vmem>>, %arg1: memref<32x64xf32, #tpu.memory_space<vmem>>, %arg2: memref<1x64xf32, #tpu.memory_space<vmem>>, %arg3: memref<64x32xf32, #tpu.memory_space<vmem>>, %arg4: memref<1x32xf32, #tpu.memory_space<vmem>>, %arg5: memref<32x32xf32, #tpu.memory_space<vmem>>) attributes {dimension_semantics = [], scalar_prefetch = 0 : i64, scratch_operands = 0 : i64, tpu.core_type = #tpu.core_type<tc>} {
    %c0 = arith.constant 0 : index
    %c0_0 = arith.constant 0 : index
    %0 = vector.load %arg0[%c0, %c0_0] : memref<32x32xf32, #tpu.memory_space<vmem>>, vector<32x32xf32>
    %c0_1 = arith.constant 0 : index
    %c0_2 = arith.constant 0 : index
    %1 = vector.load %arg1[%c0_1, %c0_2] : memref<32x64xf32, #tpu.memory_space<vmem>>, vector<32x64xf32>
    %cst = arith.constant dense<0.000000e+00> : vector<32x64xf32>
    %2 = tpu.matmul %0, %1, %cst {dimension_numbers = #tpu.dot_dimension_numbers<[1], [0], [0], [1], [0, 0, 1, 1], [], []>} : vector<32x32xf32>, vector<32x64xf32>, vector<32x64xf32> -> vector<32x64xf32>
    %c0_3 = arith.constant 0 : index
    %c0_4 = arith.constant 0 : index
    %3 = vector.load %arg2[%c0_3, %c0_4] : memref<1x64xf32, #tpu.memory_space<vmem>>, vector<1x64xf32>
    %4 = vector.broadcast %3 : vector<1x64xf32> to vector<32x64xf32>
    %5 = arith.addf %2, %4 : vector<32x64xf32>
    %cst_5 = arith.constant 0.000000e+00 : f32
    %6 = vector.broadcast %cst_5 : f32 to vector<32x64xf32>
    %7 = arith.maximumf %5, %6 : vector<32x64xf32>
    %c0_6 = arith.constant 0 : index
    %c0_7 = arith.constant 0 : index
    %8 = vector.load %arg3[%c0_6, %c0_7] : memref<64x32xf32, #tpu.memory_space<vmem>>, vector<64x32xf32>
    %cst_8 = arith.constant dense<0.000000e+00> : vector<32x32xf32>
    %9 = tpu.matmul %7, %8, %cst_8 {dimension_numbers = #tpu.dot_dimension_numbers<[1], [0], [0], [1], [0, 0, 1, 1], [], []>} : vector<32x64xf32>, vector<64x32xf32>, vector<32x32xf32> -> vector<32x32xf32>
    %c0_9 = arith.constant 0 : index
    %c0_10 = arith.constant 0 : index
    %10 = vector.load %arg4[%c0_9, %c0_10] : memref<1x32xf32, #tpu.memory_space<vmem>>, vector<1x32xf32>
    %11 = vector.broadcast %10 : vector<1x32xf32> to vector<32x32xf32>
    %12 = arith.addf %9, %11 : vector<32x32xf32>
    %c0_11 = arith.constant 0 : index
    %c0_12 = arith.constant 0 : index
    %13 = vector.load %arg5[%c0_11, %c0_12] : memref<32x32xf32, #tpu.memory_space<vmem>>, vector<32x32xf32>
    tpu.vector_store %arg5[%c0_11, %c0_12], %12 {strides = array<i32>} : memref<32x32xf32, #tpu.memory_space<vmem>>, vector<32x32xf32>,
    return
  }
}

</mosaic_0001>

<llo_original>
// kernel: tpu_custom_call.1
$region0: #{tpu_custom_call.1}
  #allocation0 [shape = 'u32[]', space=smem, size = 0x4, offset = 0x4, fixed_abs, tag = 'smem constant byte address 0x4 - core index']
  #allocation1 [shape = 'u32[144,128]{1,0:T(1,128)}', space=vmem, size = 0x12000, scoped, tag = 'internal scratch']
  %s0 = inlined_call_operand.vmem [shape: f32[32,32], index: 0, kind: input, shape index: {}]
  %s1 = inlined_call_operand.vmem [shape: f32[32,64], index: 1, kind: input, shape index: {}]
  %s2 = inlined_call_operand.vmem [shape: f32[1,64], index: 2, kind: input, shape index: {}]
  %s3 = inlined_call_operand.vmem [shape: f32[64,32], index: 3, kind: input, shape index: {}]
  %s4 = inlined_call_operand.vmem [shape: f32[1,32], index: 4, kind: input, shape index: {}]
  %s5 = inlined_call_operand.hbm [shape: f32[32,32], index: 5, kind: output, shape index: {}]
  %s6 = sld [smem:[#allocation0]]
  $region30: #{tpu_custom_call.1} parent=0
    _
  %s8 = ssub.s32 1, %s6
  %s9 = scalar_select 0, %s8, %s6
  $region1: #{tpu_custom_call.1} parent=0
    #allocation2 [shape = 'u8[16384]{0}', space=vmem, size = 0x4000, scoped, tag = 'output window, operand 0, single buffered']
    #allocation3 [shape = 's32[1]{0}', space=sflag, size = 0x4, scoped, tag = 'scoped memory for tpu_custom_call.1']
    %10 = vsyncpa [#allocation3], 0
    // Predicated region
    $region2: #{tpu_custom_call.1} parent=1 // pred_check
      _
    $region3: #{tpu_custom_call.1} parent=1 // pred_check_branch
      %12 = sbr.rel (0) target = $region5
    $region4: #{tpu_custom_call.1} parent=1 // pred_region
      _
    $region5: #{tpu_custom_call.1} parent=1 // pred_fallthru
      _
    // Predicated region
    $region6: #{tpu_custom_call.1} parent=1 // pred_check
      _
    $region7: #{tpu_custom_call.1} parent=1 // pred_check_branch
      %14 = sbr.rel (0) target = $region9
    $region8: #{tpu_custom_call.1} parent=1 // pred_region
      _
    $region9: #{tpu_custom_call.1} parent=1 // pred_fallthru
      _
    // Predicated region
    $region10: #{tpu_custom_call.1} parent=1 // pred_check
      _
    $region11: #{tpu_custom_call.1} parent=1 // pred_check_branch
      %16 = sbr.rel (0) target = $region13
    $region12: #{tpu_custom_call.1} parent=1 // pred_region
      _
    $region13: #{tpu_custom_call.1} parent=1 // pred_fallthru
      _
    // Predicated region
    $region14: #{tpu_custom_call.1} parent=1 // pred_check
      _
    $region15: #{tpu_custom_call.1} parent=1 // pred_check_branch
      %18 = sbr.rel (0) target = $region17
    $region16: #{tpu_custom_call.1} parent=1 // pred_region
      _
    $region17: #{tpu_custom_call.1} parent=1 // pred_fallthru
      _
    // Predicated region
    $region18: #{tpu_custom_call.1} parent=1 // pred_check
      _
    $region19: #{tpu_custom_call.1} parent=1 // pred_check_branch
      %20 = sbr.rel (0) target = $region21
    $region20: #{tpu_custom_call.1} parent=1 // pred_region
      _
    $region21: #{tpu_custom_call.1} parent=1 // pred_fallthru
      _
    %v21 = vld [vmem:[%s0] sm:$0xff]
    %v22 = vld [vmem:[%s0 + $0x8] sm:$0xff]
    %v23 = vld [vmem:[%s0 + $0x10] sm:$0xff]
    %v24 = vld [vmem:[%s0 + $0x18] sm:$0xff]
    %v25 = vld [vmem:[%s1] sm:$0xff]
    %v26 = vld [vmem:[%s1 + $0x8] sm:$0xff]
    %v27 = vld [vmem:[%s1 + $0x10] sm:$0xff]
    %v28 = vld [vmem:[%s1 + $0x18] sm:$0xff]
    %v29 = vld [vmem:[%s2] sm:$0x1]
    %v31 = vlaneseq
    %v32 = vshrl.u32 %v31, 7
    %v33 = vsub.s32 0, %v32
    %v34 = vrot.slane %v29, %v33
    %vm36 = vcmask 261120
    %v38 = vsel %vm36, %v21, 0
    %v41 = vsel %vm36, %v22, 0
    %v44 = vsel %vm36, %v23, 0
    %v47 = vsel %vm36, %v24, 0
    %49 = vmatprep.subr.mxu0 0.0
    %50 = vmatpush1.msra.mxu0 %v25
    %51 = vmatprep.subr.mxu0 0.0
    %52 = vmatpush1.msra.mxu0 %v26
    %53 = vmatprep.subr.mxu0 0.0
    %54 = vmatpush1.msra.mxu0 %v27
    %55 = vmatprep.subr.mxu0 0.0
    %56 = vmatpush1.msra.mxu0 %v28
    %57 = vmatprep.subr.mxu0 0.0
    %58 = vmatpush1.msra.mxu0 0.0
    %59 = vmatprep.subr.mxu0 0.0
    %60 = vmatpush1.msra.mxu0 0.0
    %61 = vmatprep.subr.mxu0 0.0
    %62 = vmatpush1.msra.mxu0 0.0
    %63 = vmatprep.subr.mxu0 0.0
    %64 = vmatpush1.msra.mxu0 0.0
    %65 = vmatprep.subr.mxu0 0.0
    %66 = vmatpush1.msra.mxu0 0.0
    %67 = vmatprep.subr.mxu0 0.0
    %68 = vmatpush1.msra.mxu0 0.0
    %69 = vmatprep.subr.mxu0 0.0
    %70 = vmatpush1.msra.mxu0 0.0
    %71 = vmatprep.subr.mxu0 0.0
    %72 = vmatpush1.msra.mxu0 0.0
    %73 = vmatprep.subr.mxu0 0.0
    %74 = vmatpush1.msra.mxu0 0.0
    %75 = vmatprep.subr.mxu0 0.0
    %76 = vmatpush1.msra.mxu0 0.0
    %77 = vmatprep.subr.mxu0 0.0
    %78 = vmatpush1.msra.mxu0 0.0
    %79 = vmatprep.subr.mxu0 0.0
    %80 = vmatpush1.msra.mxu0 0.0
    %81 = vmatprep.subr.mxu0 0.0
    %82 = vmatpush1.msra.mxu0 0.0
    %83 = vmatprep.subr.mxu0 0.0
    %84 = vmatpush1.msra.mxu0 0.0
    %85 = vmatprep.subr.mxu0 0.0
    %86 = vmatpush1.msra.mxu0 0.0
    %87 = vmatprep.subr.mxu0 0.0
    %88 = vmatpush1.msra.mxu0 0.0
    %89 = vmatprep.subr.mxu0 0.0
    %90 = vmatpush1.msra.mxu0 0.0
    %91 = vmatprep.subr.mxu0 0.0
    %92 = vmatpush1.msra.mxu0 0.0
    %93 = vmatprep.subr.mxu0 0.0
    %94 = vmatpush1.msra.mxu0 0.0
    %95 = vmatprep.subr.mxu0 0.0
    %96 = vmatpush1.msra.mxu0 0.0
    %97 = vmatprep.subr.mxu0 0.0
    %98 = vmatpush1.msra.mxu0 0.0
    %99 = vmatprep.subr.mxu0 0.0
    %100 = vmatpush1.msra.mxu0 0.0
    %101 = vmatprep.subr.mxu0 0.0
    %102 = vmatpush1.msra.mxu0 0.0
    %103 = vmatprep.subr.mxu0 0.0
    %104 = vmatpush1.msra.mxu0 0.0
    %105 = vmatprep.subr.mxu0 0.0
    %106 = vmatpush1.msra.mxu0 0.0
    %107 = vmatprep.subr.mxu0 0.0
    %108 = vmatpush1.msra.mxu0 0.0
    %109 = vmatprep.subr.mxu0 0.0
    %110 = vmatpush1.msra.mxu0 0.0
    %111 = vmatprep.subr.mxu0 0.0
    %112 = vmatpush1.msra.mxu0 0.0
    %113 = vmatprep.mubr.f32.mxu0 0.0
    %114 = vmatmul.mubr.f32.gmra.mrb[0].mxu0 %v38
    %v115 = vpop.f32.mrb[0].mxu0
    %v116 = vadd.f32 %v34, %v115
    %v117 = vpop.f32.mrb[0].mxu0
    %118 = vmatprep.mubr.f32.mxu0 0.0
    %119 = vmatmul.mubr.f32.gmra.mrb[0].mxu0 %v41
    %v120 = vpop.f32.mrb[0].mxu0
    %v121 = vadd.f32 %v34, %v120
    %v122 = vpop.f32.mrb[0].mxu0
    %123 = vmatprep.mubr.f32.mxu0 0.0
    %124 = vmatmul.mubr.f32.gmra.mrb[0].mxu0 %v44
    %v125 = vpop.f32.mrb[0].mxu0
    %v126 = vadd.f32 %v34, %v125
    %v127 = vpop.f32.mrb[0].mxu0
    %128 = vmatprep.mubr.f32.mxu0 0.0
    %129 = vmatmul.mubr.f32.gmra.mrb[0].mxu0 %v47
    %v130 = vpop.f32.mrb[0].mxu0
    %v131 = vadd.f32 %v34, %v130
    %v132 = vpop.f32.mrb[0].mxu0
    %133 = vdwg.mxu0
    %v134 = vmax.f32 %v116, 0.0
    %v135 = vmax.f32 %v121, 0.0
    %v136 = vmax.f32 %v126, 0.0
    %v137 = vmax.f32 %v131, 0.0
    %v138 = vld [vmem:[%s3] sm:$0xff]
    %v139 = vld [vmem:[%s3 + $0x8] sm:$0xff]
    %v140 = vld [vmem:[%s3 + $0x10] sm:$0xff]
    %v141 = vld [vmem:[%s3 + $0x18] sm:$0xff]
    %v142 = vld [vmem:[%s3 + $0x20] sm:$0xff]
    %v143 = vld [vmem:[%s3 + $0x28] sm:$0xff]
    %v144 = vld [vmem:[%s3 + $0x30] sm:$0xff]
    %v145 = vld [vmem:[%s3 + $0x38] sm:$0xff]
    %v146 = vld [vmem:[%s4] sm:$0x1]
    %v148 = vlaneseq
    %v149 = vshrl.u32 %v148, 7
    %v150 = vsub.s32 0, %v149
    %v151 = vrot.slane %v146, %v150
    %vm153 = vcmask 523264
    %v155 = vsel %vm153, %v134, 0
    %v158 = vsel %vm153, %v135, 0
    %v161 = vsel %vm153, %v136, 0
    %v164 = vsel %vm153, %v137, 0
    %166 = vmatprep.subr.mxu0 0.0
    %167 = vmatpush1.msra.mxu0 %v138
    %168 = vmatprep.subr.mxu0 0.0
    %169 = vmatpush1.msra.mxu0 %v139
    %170 = vmatprep.subr.mxu0 0.0
    %171 = vmatpush1.msra.mxu0 %v140
    %172 = vmatprep.subr.mxu0 0.0
    %173 = vmatpush1.msra.mxu0 %v141
    %174 = vmatprep.subr.mxu0 0.0
    %175 = vmatpush1.msra.mxu0 %v142
    %176 = vmatprep.subr.mxu0 0.0
    %177 = vmatpush1.msra.mxu0 %v143
    %178 = vmatprep.subr.mxu0 0.0
    %179 = vmatpush1.msra.mxu0 %v144
    %180 = vmatprep.subr.mxu0 0.0
    %181 = vmatpush1.msra.mxu0 %v145
    %182 = vmatprep.subr.mxu0 0.0
    %183 = vmatpush1.msra.mxu0 0.0
    %184 = vmatprep.subr.mxu0 0.0
    %185 = vmatpush1.msra.mxu0 0.0
    %186 = vmatprep.subr.mxu0 0.0
    %187 = vmatpush1.msra.mxu0 0.0
    %188 = vmatprep.subr.mxu0 0.0
    %189 = vmatpush1.msra.mxu0 0.0
    %190 = vmatprep.subr.mxu0 0.0
    %191 = vmatpush1.msra.mxu0 0.0
    %192 = vmatprep.subr.mxu0 0.0
    %193 = vmatpush1.msra.mxu0 0.0
    %194 = vmatprep.subr.mxu0 0.0
    %195 = vmatpush1.msra.mxu0 0.0
    %196 = vmatprep.subr.mxu0 0.0
    %197 = vmatpush1.msra.mxu0 0.0
    %198 = vmatprep.subr.mxu0 0.0
    %199 = vmatpush1.msra.mxu0 0.0
    %200 = vmatprep.subr.mxu0 0.0
    %201 = vmatpush1.msra.mxu0 0.0
    %202 = vmatprep.subr.mxu0 0.0
    %203 = vmatpush1.msra.mxu0 0.0
    %204 = vmatprep.subr.mxu0 0.0
    %205 = vmatpush1.msra.mxu0 0.0
    %206 = vmatprep.subr.mxu0 0.0
    %207 = vmatpush1.msra.mxu0 0.0
    %208 = vmatprep.subr.mxu0 0.0
    %209 = vmatpush1.msra.mxu0 0.0
    %210 = vmatprep.subr.mxu0 0.0
    %211 = vmatpush1.msra.mxu0 0.0
    %212 = vmatprep.subr.mxu0 0.0
    %213 = vmatpush1.msra.mxu0 0.0
    %214 = vmatprep.subr.mxu0 0.0
    %215 = vmatpush1.msra.mxu0 0.0
    %216 = vmatprep.subr.mxu0 0.0
    %217 = vmatpush1.msra.mxu0 0.0
    %218 = vmatprep.subr.mxu0 0.0
    %219 = vmatpush1.msra.mxu0 0.0
    %220 = vmatprep.subr.mxu0 0.0
    %221 = vmatpush1.msra.mxu0 0.0
    %222 = vmatprep.subr.mxu0 0.0
    %223 = vmatpush1.msra.mxu0 0.0
    %224 = vmatprep.subr.mxu0 0.0
    %225 = vmatpush1.msra.mxu0 0.0
    %226 = vmatprep.subr.mxu0 0.0
    %227 = vmatpush1.msra.mxu0 0.0
    %228 = vmatprep.subr.mxu0 0.0
    %229 = vmatpush1.msra.mxu0 0.0
    %230 = vmatprep.mubr.f32.mxu0 0.0
    %231 = vmatmul.mubr.f32.gmra.mrb[0].mxu0 %v155
    %v232 = vpop.f32.mrb[0].mxu0
    %v233 = vadd.f32 %v151, %v232
    %v234 = vpop.f32.mrb[0].mxu0
    %235 = vmatprep.mubr.f32.mxu0 0.0
    %236 = vmatmul.mubr.f32.gmra.mrb[0].mxu0 %v158
    %v237 = vpop.f32.mrb[0].mxu0
    %v238 = vadd.f32 %v151, %v237
    %v239 = vpop.f32.mrb[0].mxu0
    %240 = vmatprep.mubr.f32.mxu0 0.0
    %241 = vmatmul.mubr.f32.gmra.mrb[0].mxu0 %v161
    %v242 = vpop.f32.mrb[0].mxu0
    %v243 = vadd.f32 %v151, %v242
    %v244 = vpop.f32.mrb[0].mxu0
    %245 = vmatprep.mubr.f32.mxu0 0.0
    %246 = vmatmul.mubr.f32.gmra.mrb[0].mxu0 %v164
    %v247 = vpop.f32.mrb[0].mxu0
    %v248 = vadd.f32 %v151, %v247
    %v249 = vpop.f32.mrb[0].mxu0
    %250 = vdwg.mxu0
    %251 = vst.msk [vmem:[#allocation2] sm:$0xff] %vm36, %v233
    %252 = vst.msk [vmem:[#allocation2 + $0x8] sm:$0xff] %vm36, %v238
    %253 = vst.msk [vmem:[#allocation2 + $0x10] sm:$0xff] %vm36, %v243
    %254 = vst.msk [vmem:[#allocation2 + $0x18] sm:$0xff] %vm36, %v248
    // Predicated region
    $region22: #{tpu_custom_call.1} parent=1 // pred_check
      _
    $region23: #{tpu_custom_call.1} parent=1 // pred_check_branch
      %256 = sbr.rel (0) target = $region25
    $region24: #{tpu_custom_call.1} parent=1 // pred_region
      %s258 = ssub.s32 512, 512
      %259 = vsyncadd [#allocation3], %s258
      %s260 = sshll.u32 [#allocation2], 4
      %s261 = int_to_ptr.vmem [resolvable:$true] %s260
      %266 = dma.vmem_to_hbm [thread:$0]  %s261, 512, %s5, [#allocation3], 128, 128, 8
    $region25: #{tpu_custom_call.1} parent=1 // pred_fallthru
      _
    // Predicated region
    $region26: #{tpu_custom_call.1} parent=1 // pred_check
      _
    $region27: #{tpu_custom_call.1} parent=1 // pred_check_branch
      %268 = sbr.rel (0) target = $region29
    $region28: #{tpu_custom_call.1} parent=1 // pred_region
      %269 = dma.done [#allocation3], 512
    $region29: #{tpu_custom_call.1} parent=1 // pred_fallthru
      _
    %270 = vsyncpa [#allocation3], 1

</llo_original>
